<compile_context>
chip_gen: v5e
topology: v5e:2x2
jax: 0.10.0
libtpu: 0.0.40
codegen_flags: <defaults>
</compile_context>

<pallas_src>
import jax
import jax.numpy as jnp
from jax.experimental import pallas as pl
from jax.experimental.pallas import tpu as pltpu

D_MODEL = 32
NUM_HEADS = 4
D_FF = 64
HEAD_DIM = D_MODEL // NUM_HEADS
LN_EPS = 1e-5


def decoder_layer_kernel(x_ref, bias_ref,
                         wqkv_ref, bqkv_ref, wo_ref, bo_ref,
                         w1_ref, b1_ref, w2_ref, b2_ref,
                         g1_ref, be1_ref, g2_ref, be2_ref,
                         out_ref):
    bb, S, D = x_ref.shape
    N = bb * S

    x = x_ref[...].reshape(N, D).astype(jnp.float32)      # (N, D), residual path in f32
    x_bf = x.astype(jnp.bfloat16)
    bias = bias_ref[...]                                   # (N, N) additive mask bias, f32

    # ---- Fused multi-head QKV projection (heads = leading batch dim) ----
    qkv = jnp.einsum('nd,hdk->hnk', x_bf, wqkv_ref[...],
                     preferred_element_type=jnp.float32) + bqkv_ref[...]  # (H, N, 3*hd)
    qh = qkv[:, :, :HEAD_DIM]                               # scale already folded in
    kh = qkv[:, :, HEAD_DIM:2 * HEAD_DIM]
    vh = qkv[:, :, 2 * HEAD_DIM:]

    # ---- Attention scores + masked softmax (f32) ----
    s = jnp.einsum('hqd,hkd->hqk',
                   qh.astype(jnp.bfloat16), kh.astype(jnp.bfloat16),
                   preferred_element_type=jnp.float32) + bias            # (H, N, N)
    s = s - jnp.max(s, axis=-1, keepdims=True)
    p = jnp.exp(s)
    p = p * pl.reciprocal(jnp.sum(p, axis=-1, keepdims=True), approx=True)

    # ---- Attention output + output projection folded per head ----
    oh = jnp.einsum('hqk,hkd->hqd',
                    p.astype(jnp.bfloat16), vh.astype(jnp.bfloat16),
                    preferred_element_type=jnp.float32)                  # (H, N, hd)
    proj = jnp.einsum('hnd,hdk->hnk',
                      oh.astype(jnp.bfloat16), wo_ref[...],
                      preferred_element_type=jnp.float32)                # (H, N, D)
    attn_out = jnp.sum(proj, axis=0) + bo_ref[...]                       # (N, D)

    # dropout1: identity (eval mode)

    # ---- Residual + LayerNorm 1 ----
    h1 = x + attn_out
    mu1 = jnp.mean(h1, axis=-1, keepdims=True)
    var1 = jnp.mean((h1 - mu1) ** 2, axis=-1, keepdims=True)
    out1 = (h1 - mu1) * jax.lax.rsqrt(var1 + LN_EPS) * g1_ref[...] + be1_ref[...]

    # ---- Feed-forward: Linear -> ReLU -> Linear ----
    ff = jnp.dot(out1.astype(jnp.bfloat16), w1_ref[...],
                 preferred_element_type=jnp.float32) + b1_ref[...]
    ff = jnp.maximum(ff, 0.0)
    ff = jnp.dot(ff.astype(jnp.bfloat16), w2_ref[...],
                 preferred_element_type=jnp.float32) + b2_ref[...]

    # dropout2: identity (eval mode)

    # ---- Residual + LayerNorm 2 ----
    h2 = out1 + ff
    mu2 = jnp.mean(h2, axis=-1, keepdims=True)
    var2 = jnp.mean((h2 - mu2) ** 2, axis=-1, keepdims=True)
    out2 = (h2 - mu2) * jax.lax.rsqrt(var2 + LN_EPS) * g2_ref[...] + be2_ref[...]

    out_ref[...] = out2.reshape(bb, S, D).astype(out_ref.dtype)


def _prepare_inputs(mask, params, bb):
    """Wrapper-side (XLA) parameter fusion / layout prep — free w.r.t. the kernel."""
    (wq, bq, wk, bk, wv, bv, wo, bo, w1, b1, w2, b2, g1, be1, g2, be2) = params
    scale = jnp.float32(1.0 / (HEAD_DIM ** 0.5))

    def w_heads(w):   # (D, D) -> (H, D, hd)
        return w.reshape(D_MODEL, NUM_HEADS, HEAD_DIM).transpose(1, 0, 2)

    def b_heads(b):   # (1, D) -> (H, 1, hd)
        return b.reshape(NUM_HEADS, HEAD_DIM)[:, None, :]

    # Fused per-head QKV weight/bias; 1/sqrt(hd) folded into the Q part.
    wqkv_h = jnp.concatenate(
        [w_heads(wq * scale), w_heads(wk), w_heads(wv)], axis=-1)       # (H, D, 3*hd)
    bqkv_h = jnp.concatenate(
        [b_heads(bq * scale), b_heads(bk), b_heads(bv)], axis=-1)       # (H, 1, 3*hd)
    wo_h = wo.reshape(NUM_HEADS, HEAD_DIM, D_MODEL)                     # (H, hd, D)

    # Additive attention bias with batch folded into rows: cross-batch masked.
    S = mask.shape[0]
    causal_bias = jnp.where(mask > 0, 0.0, -1e9).astype(jnp.float32)    # (S, S)
    bias_blk = jnp.where(jnp.eye(bb, dtype=bool)[:, None, :, None],
                         causal_bias[None, :, None, :],
                         jnp.float32(-1e9)).reshape(bb * S, bb * S)

    bf = jnp.bfloat16
    kernel_params = (wqkv_h.astype(bf), bqkv_h.astype(jnp.float32),
                     wo_h.astype(bf), bo,
                     w1.astype(bf), b1, w2.astype(bf), b2,
                     g1, be1, g2, be2)
    return bias_blk, kernel_params


def decoder_layer(x, mask, params, *, batch_blocks=1):
    """batch_blocks=1 for v5e/v6e (single TensorCore); use 2 on v7x to shard the
    'parallel' grid axis across its two TensorCores."""
    B, S, D = x.shape
    assert B % batch_blocks == 0
    bb = B // batch_blocks

    bias_blk, kparams = _prepare_inputs(mask, params, bb)

    def full_spec(a):
        nd = a.ndim
        return pl.BlockSpec(a.shape, lambda i, nd=nd: (0,) * nd)

    in_specs = [
        pl.BlockSpec((bb, S, D), lambda i: (i, 0, 0)),   # x: one batch block per step
        full_spec(bias_blk),                              # additive mask bias (shared)
    ] + [full_spec(p) for p in kparams]

    return pl.pallas_call(
        decoder_layer_kernel,
        out_shape=jax.ShapeDtypeStruct((B, S, D), x.dtype),
        grid=(batch_blocks,),
        in_specs=in_specs,
        out_specs=pl.BlockSpec((bb, S, D), lambda i: (i, 0, 0)),
        compiler_params=pltpu.CompilerParams(dimension_semantics=("parallel",)),
    )(x, bias_blk, *kparams)


def reference(x, mask, params):
    (wq, bq, wk, bk, wv, bv, wo, bo, w1, b1, w2, b2, g1, be1, g2, be2) = params
    B, S, D = x.shape
    q = (x @ wq + bq).reshape(B, S, NUM_HEADS, HEAD_DIM).transpose(0, 2, 1, 3)
    k = (x @ wk + bk).reshape(B, S, NUM_HEADS, HEAD_DIM).transpose(0, 2, 1, 3)
    v = (x @ wv + bv).reshape(B, S, NUM_HEADS, HEAD_DIM).transpose(0, 2, 1, 3)
    s = jnp.einsum('bhqd,bhkd->bhqk', q, k) / jnp.sqrt(jnp.float32(HEAD_DIM))
    s = jnp.where(mask[None, None] > 0, s, -1e9)
    p = jax.nn.softmax(s, axis=-1)
    attn = jnp.einsum('bhqk,bhkd->bhqd', p, v).transpose(0, 2, 1, 3).reshape(B, S, D)
    attn_out = attn @ wo + bo

    def ln(h, g, b):
        mu = h.mean(-1, keepdims=True)
        var = ((h - mu) ** 2).mean(-1, keepdims=True)
        return (h - mu) / jnp.sqrt(var + LN_EPS) * g + b

    out1 = ln(x + attn_out, g1, be1)
    ff = jnp.maximum(out1 @ w1 + b1, 0.0) @ w2 + b2
    return ln(out1 + ff, g2, be2)


def init_params(key):
    ks = jax.random.split(key, 6)
    scale = 0.1
    wq = scale * jax.random.normal(ks[0], (D_MODEL, D_MODEL), jnp.float32)
    wk = scale * jax.random.normal(ks[1], (D_MODEL, D_MODEL), jnp.float32)
    wv = scale * jax.random.normal(ks[2], (D_MODEL, D_MODEL), jnp.float32)
    wo = scale * jax.random.normal(ks[3], (D_MODEL, D_MODEL), jnp.float32)
    w1 = scale * jax.random.normal(ks[4], (D_MODEL, D_FF), jnp.float32)
    w2 = scale * jax.random.normal(ks[5], (D_FF, D_MODEL), jnp.float32)
    bq = jnp.zeros((1, D_MODEL), jnp.float32)
    bk = jnp.zeros((1, D_MODEL), jnp.float32)
    bv = jnp.zeros((1, D_MODEL), jnp.float32)
    bo = jnp.zeros((1, D_MODEL), jnp.float32)
    b1 = jnp.zeros((1, D_FF), jnp.float32)
    b2 = jnp.zeros((1, D_MODEL), jnp.float32)
    g1 = jnp.ones((1, D_MODEL), jnp.float32)
    be1 = jnp.zeros((1, D_MODEL), jnp.float32)
    g2 = jnp.ones((1, D_MODEL), jnp.float32)
    be2 = jnp.zeros((1, D_MODEL), jnp.float32)
    return (wq, bq, wk, bk, wv, bv, wo, bo, w1, b1, w2, b2, g1, be1, g2, be2)


if __name__ == "__main__":
    B, S = 2, 8
    key = jax.random.PRNGKey(0)
    kx, kp = jax.random.split(key)
    x = jax.random.normal(kx, (B, S, D_MODEL), jnp.float32)
    # causal mask: 1.0 = attend, 0.0 = masked
    mask = jnp.tril(jnp.ones((S, S), jnp.float32))
    params = init_params(kp)

    out = decoder_layer(x, mask, params)     # batch_blocks=1 (v5e/v6e); use 2 on v7x
    out = jax.block_until_ready(out)

    ref = reference(x, mask, params)
    assert out.shape == (B, S, D_MODEL)
    # Tolerance loosened vs. the pure-f32 reference because MXU operands are
    # bf16 (f32 accumulation) and the softmax reciprocal is approx (EUP).
    assert jnp.allclose(out, ref, atol=3e-2, rtol=3e-2), (
        f"max err {jnp.max(jnp.abs(out - ref))}")
    print("KERNEL_OK")
</pallas_src>

<mosaic_0001>
module attributes {stable_mosaic.version = 11 : i64} {
  func.func @decoder_layer_kernel(%arg0: i32, %arg1: memref<2x8x32xf32, #tpu.memory_space<vmem>>, %arg2: memref<16x16xf32, #tpu.memory_space<vmem>>, %arg3: memref<4x32x24xbf16, #tpu.memory_space<vmem>>, %arg4: memref<4x1x24xf32, #tpu.memory_space<vmem>>, %arg5: memref<4x8x32xbf16, #tpu.memory_space<vmem>>, %arg6: memref<1x32xf32, #tpu.memory_space<vmem>>, %arg7: memref<32x64xbf16, #tpu.memory_space<vmem>>, %arg8: memref<1x64xf32, #tpu.memory_space<vmem>>, %arg9: memref<64x32xbf16, #tpu.memory_space<vmem>>, %arg10: memref<1x32xf32, #tpu.memory_space<vmem>>, %arg11: memref<1x32xf32, #tpu.memory_space<vmem>>, %arg12: memref<1x32xf32, #tpu.memory_space<vmem>>, %arg13: memref<1x32xf32, #tpu.memory_space<vmem>>, %arg14: memref<1x32xf32, #tpu.memory_space<vmem>>, %arg15: memref<2x8x32xf32, #tpu.memory_space<vmem>>) attributes {dimension_semantics = [#tpu.dimension_semantics<parallel>], iteration_bounds = array<i64: 1>, scalar_prefetch = 0 : i64, scratch_operands = 0 : i64, tpu.core_type = #tpu.core_type<tc>, window_params = [{transform_indices = @transform_0, window_bounds = array<i64: 2, 8, 32>}, {pipeline_mode = #tpu.pipeline_mode<synchronous>, transform_indices = @transform_1, window_bounds = array<i64: 16, 16>}, {pipeline_mode = #tpu.pipeline_mode<synchronous>, transform_indices = @transform_2, window_bounds = array<i64: 4, 32, 24>}, {pipeline_mode = #tpu.pipeline_mode<synchronous>, transform_indices = @transform_3, window_bounds = array<i64: 4, 1, 24>}, {pipeline_mode = #tpu.pipeline_mode<synchronous>, transform_indices = @transform_4, window_bounds = array<i64: 4, 8, 32>}, {pipeline_mode = #tpu.pipeline_mode<synchronous>, transform_indices = @transform_5, window_bounds = array<i64: 1, 32>}, {pipeline_mode = #tpu.pipeline_mode<synchronous>, transform_indices = @transform_6, window_bounds = array<i64: 32, 64>}, {pipeline_mode = #tpu.pipeline_mode<synchronous>, transform_indices = @transform_7, window_bounds = array<i64: 1, 64>}, {pipeline_mode = #tpu.pipeline_mode<synchronous>, transform_indices = @transform_8, window_bounds = array<i64: 64, 32>}, {pipeline_mode = #tpu.pipeline_mode<synchronous>, transform_indices = @transform_9, window_bounds = array<i64: 1, 32>}, {pipeline_mode = #tpu.pipeline_mode<synchronous>, transform_indices = @transform_10, window_bounds = array<i64: 1, 32>}, {pipeline_mode = #tpu.pipeline_mode<synchronous>, transform_indices = @transform_11, window_bounds = array<i64: 1, 32>}, {pipeline_mode = #tpu.pipeline_mode<synchronous>, transform_indices = @transform_12, window_bounds = array<i64: 1, 32>}, {pipeline_mode = #tpu.pipeline_mode<synchronous>, transform_indices = @transform_13, window_bounds = array<i64: 1, 32>}, {transform_indices = @transform_14, window_bounds = array<i64: 2, 8, 32>}]} {
    %c0 = arith.constant 0 : index
    %c0_0 = arith.constant 0 : index
    %c0_1 = arith.constant 0 : index
    %0 = vector.load %arg1[%c0, %c0_0, %c0_1] : memref<2x8x32xf32, #tpu.memory_space<vmem>>, vector<2x8x32xf32>
    %1 = vector.shape_cast %0 : vector<2x8x32xf32> to vector<16x32xf32>
    %2 = arith.truncf %1 : vector<16x32xf32> to vector<16x32xbf16>
    %c0_2 = arith.constant 0 : index
    %c0_3 = arith.constant 0 : index
    %3 = vector.load %arg2[%c0_2, %c0_3] : memref<16x16xf32, #tpu.memory_space<vmem>>, vector<16x16xf32>
    %c0_4 = arith.constant 0 : index
    %c0_5 = arith.constant 0 : index
    %c0_6 = arith.constant 0 : index
    %4 = vector.load %arg3[%c0_4, %c0_5, %c0_6] : memref<4x32x24xbf16, #tpu.memory_space<vmem>>, vector<4x32x24xbf16>
    "tpu.trace_start"() <{level = 10 : i32, message = "nd,hdk->hnk"}> : () -> ()
    %cst = arith.constant dense<0.000000e+00> : vector<4x24x16xf32>
    %5 = tpu.matmul %4, %2, %cst {dimension_numbers = #tpu.dot_dimension_numbers<[1], [1], [0, 2], [0], [0, 0, 0, 2, 1, 0], [], []>} : vector<4x32x24xbf16>, vector<16x32xbf16>, vector<4x24x16xf32> -> vector<4x24x16xf32>
    %6 = tpu.transpose %5, [0, 2, 1] : vector<4x24x16xf32> -> vector<4x16x24xf32>
    "tpu.trace_stop"() : () -> ()
    %c0_7 = arith.constant 0 : index
    %c0_8 = arith.constant 0 : index
    %c0_9 = arith.constant 0 : index
    %7 = vector.load %arg4[%c0_7, %c0_8, %c0_9] : memref<4x1x24xf32, #tpu.memory_space<vmem>>, vector<4x1x24xf32>
    %8 = vector.broadcast %7 : vector<4x1x24xf32> to vector<4x16x24xf32>
    %9 = arith.addf %6, %8 : vector<4x16x24xf32>
    %10 = vector.extract_strided_slice %9 {offsets = [0, 0, 0], sizes = [4, 16, 8], strides = [1, 1, 1]} : vector<4x16x24xf32> to vector<4x16x8xf32>
    %11 = vector.extract_strided_slice %9 {offsets = [0, 0, 8], sizes = [4, 16, 8], strides = [1, 1, 1]} : vector<4x16x24xf32> to vector<4x16x8xf32>
    %12 = vector.extract_strided_slice %9 {offsets = [0, 0, 16], sizes = [4, 16, 8], strides = [1, 1, 1]} : vector<4x16x24xf32> to vector<4x16x8xf32>
    %13 = arith.truncf %10 : vector<4x16x8xf32> to vector<4x16x8xbf16>
    %14 = arith.truncf %11 : vector<4x16x8xf32> to vector<4x16x8xbf16>
    "tpu.trace_start"() <{level = 10 : i32, message = "hqd,hkd->hqk"}> : () -> ()
    %cst_10 = arith.constant dense<0.000000e+00> : vector<4x16x16xf32>
    %15 = tpu.matmul %13, %14, %cst_10 {dimension_numbers = #tpu.dot_dimension_numbers<[2], [2], [1], [1], [0, 0, 0, 1, 1, 1], [0], [0]>} : vector<4x16x8xbf16>, vector<4x16x8xbf16>, vector<4x16x16xf32> -> vector<4x16x16xf32>
    "tpu.trace_stop"() : () -> ()
    %16 = vector.shape_cast %3 : vector<16x16xf32> to vector<1x16x16xf32>
    %17 = vector.broadcast %16 : vector<1x16x16xf32> to vector<4x16x16xf32>
    %18 = arith.addf %15, %17 : vector<4x16x16xf32>
    %cst_11 = arith.constant dense<0xFF800000> : vector<4x16xf32>
    %19 = vector.multi_reduction <maximumf>, %18, %cst_11 [2] : vector<4x16x16xf32> to vector<4x16xf32>
    %20 = vector.shape_cast %19 : vector<4x16xf32> to vector<4x16x1xf32>
    %21 = vector.broadcast %20 : vector<4x16x1xf32> to vector<4x16x16xf32>
    %22 = arith.subf %18, %21 : vector<4x16x16xf32>
    %23 = math.exp %22 : vector<4x16x16xf32>
    %cst_12 = arith.constant dense<0.000000e+00> : vector<4x16xf32>
    %24 = vector.multi_reduction <add>, %23, %cst_12 [2] : vector<4x16x16xf32> to vector<4x16xf32>
    %25 = vector.shape_cast %24 : vector<4x16xf32> to vector<4x16x1xf32>
    %26 = tpu.reciprocal %25 {approx = true} : vector<4x16x1xf32> -> vector<4x16x1xf32>
    %27 = vector.broadcast %26 : vector<4x16x1xf32> to vector<4x16x16xf32>
    %28 = arith.mulf %23, %27 : vector<4x16x16xf32>
    %29 = arith.truncf %28 : vector<4x16x16xf32> to vector<4x16x16xbf16>
    %30 = arith.truncf %12 : vector<4x16x8xf32> to vector<4x16x8xbf16>
    "tpu.trace_start"() <{level = 10 : i32, message = "hqk,hkd->hqd"}> : () -> ()
    %cst_13 = arith.constant dense<0.000000e+00> : vector<4x16x8xf32>
    %31 = tpu.matmul %29, %30, %cst_13 {dimension_numbers = #tpu.dot_dimension_numbers<[2], [1], [1], [2], [0, 0, 0, 1, 1, 2], [0], [0]>} : vector<4x16x16xbf16>, vector<4x16x8xbf16>, vector<4x16x8xf32> -> vector<4x16x8xf32>
    "tpu.trace_stop"() : () -> ()
    %32 = arith.truncf %31 : vector<4x16x8xf32> to vector<4x16x8xbf16>
    %c0_14 = arith.constant 0 : index
    %c0_15 = arith.constant 0 : index
    %c0_16 = arith.constant 0 : index
    %33 = vector.load %arg5[%c0_14, %c0_15, %c0_16] : memref<4x8x32xbf16, #tpu.memory_space<vmem>>, vector<4x8x32xbf16>
    "tpu.trace_start"() <{level = 10 : i32, message = "hnd,hdk->hnk"}> : () -> ()
    %cst_17 = arith.constant dense<0.000000e+00> : vector<4x16x32xf32>
    %34 = tpu.matmul %32, %33, %cst_17 {dimension_numbers = #tpu.dot_dimension_numbers<[2], [1], [1], [2], [0, 0, 0, 1, 1, 2], [0], [0]>} : vector<4x16x8xbf16>, vector<4x8x32xbf16>, vector<4x16x32xf32> -> vector<4x16x32xf32>
    "tpu.trace_stop"() : () -> ()
    %cst_18 = arith.constant dense<0.000000e+00> : vector<16x32xf32>
    %35 = vector.multi_reduction <add>, %34, %cst_18 [0] : vector<4x16x32xf32> to vector<16x32xf32>
    %c0_19 = arith.constant 0 : index
    %c0_20 = arith.constant 0 : index
    %36 = vector.load %arg6[%c0_19, %c0_20] : memref<1x32xf32, #tpu.memory_space<vmem>>, vector<1x32xf32>
    %37 = vector.broadcast %36 : vector<1x32xf32> to vector<16x32xf32>
    %38 = arith.addf %35, %37 : vector<16x32xf32>
    %39 = arith.addf %1, %38 : vector<16x32xf32>
    %cst_21 = arith.constant dense<0.000000e+00> : vector<16xf32>
    %40 = vector.multi_reduction <add>, %39, %cst_21 [1] : vector<16x32xf32> to vector<16xf32>
    %41 = vector.shape_cast %40 : vector<16xf32> to vector<16x1xf32>
    %cst_22 = arith.constant 3.200000e+01 : f32
    %42 = vector.broadcast %cst_22 : f32 to vector<16x1xf32>
    %43 = arith.divf %41, %42 : vector<16x1xf32>
    %44 = vector.broadcast %43 : vector<16x1xf32> to vector<16x32xf32>
    %45 = arith.subf %39, %44 : vector<16x32xf32>
    %46 = arith.mulf %45, %45 : vector<16x32xf32>
    %cst_23 = arith.constant dense<0.000000e+00> : vector<16xf32>
    %47 = vector.multi_reduction <add>, %46, %cst_23 [1] : vector<16x32xf32> to vector<16xf32>
    %48 = vector.shape_cast %47 : vector<16xf32> to vector<16x1xf32>
    %cst_24 = arith.constant 3.200000e+01 : f32
    %49 = vector.broadcast %cst_24 : f32 to vector<16x1xf32>
    %50 = arith.divf %48, %49 : vector<16x1xf32>
    %51 = vector.broadcast %43 : vector<16x1xf32> to vector<16x32xf32>
    %52 = arith.subf %39, %51 : vector<16x32xf32>
    %cst_25 = arith.constant 9.99999974E-6 : f32
    %53 = vector.broadcast %cst_25 : f32 to vector<16x1xf32>
    %54 = arith.addf %50, %53 : vector<16x1xf32>
    %55 = math.rsqrt %54 : vector<16x1xf32>
    %56 = vector.broadcast %55 : vector<16x1xf32> to vector<16x32xf32>
    %57 = arith.mulf %52, %56 : vector<16x32xf32>
    %c0_26 = arith.constant 0 : index
    %c0_27 = arith.constant 0 : index
    %58 = vector.load %arg11[%c0_26, %c0_27] : memref<1x32xf32, #tpu.memory_space<vmem>>, vector<1x32xf32>
    %59 = vector.broadcast %58 : vector<1x32xf32> to vector<16x32xf32>
    %60 = arith.mulf %57, %59 : vector<16x32xf32>
    %c0_28 = arith.constant 0 : index
    %c0_29 = arith.constant 0 : index
    %61 = vector.load %arg12[%c0_28, %c0_29] : memref<1x32xf32, #tpu.memory_space<vmem>>, vector<1x32xf32>
    %62 = vector.broadcast %61 : vector<1x32xf32> to vector<16x32xf32>
    %63 = arith.addf %60, %62 : vector<16x32xf32>
    %64 = arith.truncf %63 : vector<16x32xf32> to vector<16x32xbf16>
    %c0_30 = arith.constant 0 : index
    %c0_31 = arith.constant 0 : index
    %65 = vector.load %arg7[%c0_30, %c0_31] : memref<32x64xbf16, #tpu.memory_space<vmem>>, vector<32x64xbf16>
    %cst_32 = arith.constant dense<0.000000e+00> : vector<16x64xf32>
    %66 = tpu.matmul %64, %65, %cst_32 {dimension_numbers = #tpu.dot_dimension_numbers<[1], [0], [0], [1], [0, 0, 1, 1], [], []>} : vector<16x32xbf16>, vector<32x64xbf16>, vector<16x64xf32> -> vector<16x64xf32>
    %c0_33 = arith.constant 0 : index
    %c0_34 = arith.constant 0 : index
    %67 = vector.load %arg8[%c0_33, %c0_34] : memref<1x64xf32, #tpu.memory_space<vmem>>, vector<1x64xf32>
    %68 = vector.broadcast %67 : vector<1x64xf32> to vector<16x64xf32>
    %69 = arith.addf %66, %68 : vector<16x64xf32>
    %cst_35 = arith.constant 0.000000e+00 : f32
    %70 = vector.broadcast %cst_35 : f32 to vector<16x64xf32>
    %71 = arith.maximumf %69, %70 : vector<16x64xf32>
    %72 = arith.truncf %71 : vector<16x64xf32> to vector<16x64xbf16>
    %c0_36 = arith.constant 0 : index
    %c0_37 = arith.constant 0 : index
    %73 = vector.load %arg9[%c0_36, %c0_37] : memref<64x32xbf16, #tpu.memory_space<vmem>>, vector<64x32xbf16>
    %cst_38 = arith.constant dense<0.000000e+00> : vector<16x32xf32>
    %74 = tpu.matmul %72, %73, %cst_38 {dimension_numbers = #tpu.dot_dimension_numbers<[1], [0], [0], [1], [0, 0, 1, 1], [], []>} : vector<16x64xbf16>, vector<64x32xbf16>, vector<16x32xf32> -> vector<16x32xf32>
    %c0_39 = arith.constant 0 : index
    %c0_40 = arith.constant 0 : index
    %75 = vector.load %arg10[%c0_39, %c0_40] : memref<1x32xf32, #tpu.memory_space<vmem>>, vector<1x32xf32>
    %76 = vector.broadcast %75 : vector<1x32xf32> to vector<16x32xf32>
    %77 = arith.addf %74, %76 : vector<16x32xf32>
    %78 = arith.addf %63, %77 : vector<16x32xf32>
    %cst_41 = arith.constant dense<0.000000e+00> : vector<16xf32>
    %79 = vector.multi_reduction <add>, %78, %cst_41 [1] : vector<16x32xf32> to vector<16xf32>
    %80 = vector.shape_cast %79 : vector<16xf32> to vector<16x1xf32>
    %cst_42 = arith.constant 3.200000e+01 : f32
    %81 = vector.broadcast %cst_42 : f32 to vector<16x1xf32>
    %82 = arith.divf %80, %81 : vector<16x1xf32>
    %83 = vector.broadcast %82 : vector<16x1xf32> to vector<16x32xf32>
    %84 = arith.subf %78, %83 : vector<16x32xf32>
    %85 = arith.mulf %84, %84 : vector<16x32xf32>
    %cst_43 = arith.constant dense<0.000000e+00> : vector<16xf32>
    %86 = vector.multi_reduction <add>, %85, %cst_43 [1] : vector<16x32xf32> to vector<16xf32>
    %87 = vector.shape_cast %86 : vector<16xf32> to vector<16x1xf32>
    %cst_44 = arith.constant 3.200000e+01 : f32
    %88 = vector.broadcast %cst_44 : f32 to vector<16x1xf32>
    %89 = arith.divf %87, %88 : vector<16x1xf32>
    %90 = vector.broadcast %82 : vector<16x1xf32> to vector<16x32xf32>
    %91 = arith.subf %78, %90 : vector<16x32xf32>
    %cst_45 = arith.constant 9.99999974E-6 : f32
    %92 = vector.broadcast %cst_45 : f32 to vector<16x1xf32>
    %93 = arith.addf %89, %92 : vector<16x1xf32>
    %94 = math.rsqrt %93 : vector<16x1xf32>
    %95 = vector.broadcast %94 : vector<16x1xf32> to vector<16x32xf32>
    %96 = arith.mulf %91, %95 : vector<16x32xf32>
    %c0_46 = arith.constant 0 : index
    %c0_47 = arith.constant 0 : index
    %97 = vector.load %arg13[%c0_46, %c0_47] : memref<1x32xf32, #tpu.memory_space<vmem>>, vector<1x32xf32>
    %98 = vector.broadcast %97 : vector<1x32xf32> to vector<16x32xf32>
    %99 = arith.mulf %96, %98 : vector<16x32xf32>
    %c0_48 = arith.constant 0 : index
    %c0_49 = arith.constant 0 : index
    %100 = vector.load %arg14[%c0_48, %c0_49] : memref<1x32xf32, #tpu.memory_space<vmem>>, vector<1x32xf32>
    %101 = vector.broadcast %100 : vector<1x32xf32> to vector<16x32xf32>
    %102 = arith.addf %99, %101 : vector<16x32xf32>
    %103 = vector.shape_cast %102 : vector<16x32xf32> to vector<2x8x32xf32>
    %c0_50 = arith.constant 0 : index
    %c0_51 = arith.constant 0 : index
    %c0_52 = arith.constant 0 : index
    %104 = vector.load %arg15[%c0_50, %c0_51, %c0_52] : memref<2x8x32xf32, #tpu.memory_space<vmem>>, vector<2x8x32xf32>
    tpu.vector_store %arg15[%c0_50, %c0_51, %c0_52], %103 {strides = array<i32>} : memref<2x8x32xf32, #tpu.memory_space<vmem>>, vector<2x8x32xf32>,
    return
  }
  func.func @transform_0(%arg0: i32) -> (i32, i32, i32) {
    %c0_i32 = arith.constant 0 : i32
    %c0_i32_0 = arith.constant 0 : i32
    %c0_i32_1 = arith.constant 0 : i32
    return %arg0, %c0_i32, %c0_i32_0 : i32, i32, i32
  }
  func.func @transform_1(%arg0: i32) -> (i32, i32) {
    %c0_i32 = arith.constant 0 : i32
    %c0_i32_0 = arith.constant 0 : i32
    %c0_i32_1 = arith.constant 0 : i32
    return %c0_i32, %c0_i32_0 : i32, i32
  }
  func.func @transform_2(%arg0: i32) -> (i32, i32, i32) {
    %c0_i32 = arith.constant 0 : i32
    %c0_i32_0 = arith.constant 0 : i32
    %c0_i32_1 = arith.constant 0 : i32
    %c0_i32_2 = arith.constant 0 : i32
    return %c0_i32, %c0_i32_0, %c0_i32_1 : i32, i32, i32
  }
  func.func @transform_3(%arg0: i32) -> (i32, i32, i32) {
    %c0_i32 = arith.constant 0 : i32
    %c0_i32_0 = arith.constant 0 : i32
    %c0_i32_1 = arith.constant 0 : i32
    %c0_i32_2 = arith.constant 0 : i32
    return %c0_i32, %c0_i32_0, %c0_i32_1 : i32, i32, i32
  }
  func.func @transform_4(%arg0: i32) -> (i32, i32, i32) {
    %c0_i32 = arith.constant 0 : i32
    %c0_i32_0 = arith.constant 0 : i32
    %c0_i32_1 = arith.constant 0 : i32
    %c0_i32_2 = arith.constant 0 : i32
    return %c0_i32, %c0_i32_0, %c0_i32_1 : i32, i32, i32
  }
  func.func @transform_5(%arg0: i32) -> (i32, i32) {
    %c0_i32 = arith.constant 0 : i32
    %c0_i32_0 = arith.constant 0 : i32
    %c0_i32_1 = arith.constant 0 : i32
    return %c0_i32, %c0_i32_0 : i32, i32
  }
  func.func @transform_6(%arg0: i32) -> (i32, i32) {
    %c0_i32 = arith.constant 0 : i32
    %c0_i32_0 = arith.constant 0 : i32
    %c0_i32_1 = arith.constant 0 : i32
    return %c0_i32, %c0_i32_0 : i32, i32
  }
  func.func @transform_7(%arg0: i32) -> (i32, i32) {
    %c0_i32 = arith.constant 0 : i32
    %c0_i32_0 = arith.constant 0 : i32
    %c0_i32_1 = arith.constant 0 : i32
    return %c0_i32, %c0_i32_0 : i32, i32
  }
  func.func @transform_8(%arg0: i32) -> (i32, i32) {
    %c0_i32 = arith.constant 0 : i32
    %c0_i32_0 = arith.constant 0 : i32
    %c0_i32_1 = arith.constant 0 : i32
    return %c0_i32, %c0_i32_0 : i32, i32
  }
  func.func @transform_9(%arg0: i32) -> (i32, i32) {
    %c0_i32 = arith.constant 0 : i32
    %c0_i32_0 = arith.constant 0 : i32
    %c0_i32_1 = arith.constant 0 : i32
    return %c0_i32, %c0_i32_0 : i32, i32
  }
  func.func @transform_10(%arg0: i32) -> (i32, i32) {
    %c0_i32 = arith.constant 0 : i32
    %c0_i32_0 = arith.constant 0 : i32
    %c0_i32_1 = arith.constant 0 : i32
    return %c0_i32, %c0_i32_0 : i32, i32
  }
  func.func @transform_11(%arg0: i32) -> (i32, i32) {
    %c0_i32 = arith.constant 0 : i32
    %c0_i32_0 = arith.constant 0 : i32
    %c0_i32_1 = arith.constant 0 : i32
    return %c0_i32, %c0_i32_0 : i32, i32
  }
  func.func @transform_12(%arg0: i32) -> (i32, i32) {
    %c0_i32 = arith.constant 0 : i32
    %c0_i32_0 = arith.constant 0 : i32
    %c0_i32_1 = arith.constant 0 : i32
    return %c0_i32, %c0_i32_0 : i32, i32
  }
  func.func @transform_13(%arg0: i32) -> (i32, i32) {
    %c0_i32 = arith.constant 0 : i32
    %c0_i32_0 = arith.constant 0 : i32
    %c0_i32_1 = arith.constant 0 : i32
    return %c0_i32, %c0_i32_0 : i32, i32
  }
  func.func @transform_14(%arg0: i32) -> (i32, i32, i32) {
    %c0_i32 = arith.constant 0 : i32
    %c0_i32_0 = arith.constant 0 : i32
    %c0_i32_1 = arith.constant 0 : i32
    return %arg0, %c0_i32, %c0_i32_0 : i32, i32, i32
  }
}

</mosaic_0001>

<llo_original>
// kernel: tpu_custom_call.1
$region0: #{tpu_custom_call.1}
  #allocation0 [shape = 'u32[]', space=smem, size = 0x4, offset = 0x4, fixed_abs, tag = 'smem constant byte address 0x4 - core index']
  #allocation1 [shape = 'u32[72,128]{1,0:T(1,128)}', space=vmem, size = 0x9000, scoped, tag = 'internal scratch']
  %s0 = inlined_call_operand.vmem [shape: f32[2,8,32], index: 0, kind: input, shape index: {}]
  %s1 = inlined_call_operand.vmem [shape: f32[16,16], index: 1, kind: input, shape index: {}]
  %s2 = inlined_call_operand.vmem [shape: bf16[4,32,24], index: 2, kind: input, shape index: {}]
  %s3 = inlined_call_operand.vmem [shape: f32[4,1,24], index: 3, kind: input, shape index: {}]
  %s4 = inlined_call_operand.vmem [shape: bf16[4,8,32], index: 4, kind: input, shape index: {}]
  %s5 = inlined_call_operand.vmem [shape: f32[1,32], index: 5, kind: input, shape index: {}]
  %s6 = inlined_call_operand.vmem [shape: bf16[32,64], index: 6, kind: input, shape index: {}]
  %s7 = inlined_call_operand.vmem [shape: f32[1,64], index: 7, kind: input, shape index: {}]
  %s8 = inlined_call_operand.vmem [shape: bf16[64,32], index: 8, kind: input, shape index: {}]
  %s9 = inlined_call_operand.vmem [shape: f32[1,32], index: 9, kind: input, shape index: {}]
  %s10 = inlined_call_operand.vmem [shape: f32[1,32], index: 10, kind: input, shape index: {}]
  %s11 = inlined_call_operand.vmem [shape: f32[1,32], index: 11, kind: input, shape index: {}]
  %s12 = inlined_call_operand.vmem [shape: f32[1,32], index: 12, kind: input, shape index: {}]
  %s13 = inlined_call_operand.vmem [shape: f32[1,32], index: 13, kind: input, shape index: {}]
  %s14 = inlined_call_operand.hbm [shape: f32[2,8,32], index: 14, kind: output, shape index: {}]
  %s15 = sld [smem:[#allocation0]]
  $region66: #{tpu_custom_call.1} parent=0
    _
  %s17 = ssub.s32 1, %s15
  %s18 = scalar_select 0, %s17, %s15
  $region1: #{tpu_custom_call.1} parent=0
    #allocation2 [shape = 'u8[8192]{0}', space=vmem, size = 0x2000, scoped, tag = 'output window, operand 0, single buffered']
    #allocation3 [shape = 's32[1]{0}', space=sflag, size = 0x4, scoped, tag = 'scoped memory for tpu_custom_call.1']
    %19 = vsyncpa [#allocation3], 0
    // Predicated region
    $region2: #{tpu_custom_call.1} parent=1 // pred_check
      _
    $region3: #{tpu_custom_call.1} parent=1 // pred_check_branch
      %21 = sbr.rel (0) target = $region5
    $region4: #{tpu_custom_call.1} parent=1 // pred_region
      _
    $region5: #{tpu_custom_call.1} parent=1 // pred_fallthru
      _
    // Predicated region
    $region6: #{tpu_custom_call.1} parent=1 // pred_check
      _
    $region7: #{tpu_custom_call.1} parent=1 // pred_check_branch
      %23 = sbr.rel (0) target = $region9
    $region8: #{tpu_custom_call.1} parent=1 // pred_region
      _
    $region9: #{tpu_custom_call.1} parent=1 // pred_fallthru
      _
    // Predicated region
    $region10: #{tpu_custom_call.1} parent=1 // pred_check
      _
    $region11: #{tpu_custom_call.1} parent=1 // pred_check_branch
      %25 = sbr.rel (0) target = $region13
    $region12: #{tpu_custom_call.1} parent=1 // pred_region
      _
    $region13: #{tpu_custom_call.1} parent=1 // pred_fallthru
      _
    // Predicated region
    $region14: #{tpu_custom_call.1} parent=1 // pred_check
      _
    $region15: #{tpu_custom_call.1} parent=1 // pred_check_branch
      %27 = sbr.rel (0) target = $region17
    $region16: #{tpu_custom_call.1} parent=1 // pred_region
      _
    $region17: #{tpu_custom_call.1} parent=1 // pred_fallthru
      _
    // Predicated region
    $region18: #{tpu_custom_call.1} parent=1 // pred_check
      _
    $region19: #{tpu_custom_call.1} parent=1 // pred_check_branch
      %29 = sbr.rel (0) target = $region21
    $region20: #{tpu_custom_call.1} parent=1 // pred_region
      _
    $region21: #{tpu_custom_call.1} parent=1 // pred_fallthru
      _
    // Predicated region
    $region22: #{tpu_custom_call.1} parent=1 // pred_check
      _
    $region23: #{tpu_custom_call.1} parent=1 // pred_check_branch
      %31 = sbr.rel (0) target = $region25
    $region24: #{tpu_custom_call.1} parent=1 // pred_region
      _
    $region25: #{tpu_custom_call.1} parent=1 // pred_fallthru
      _
    // Predicated region
    $region26: #{tpu_custom_call.1} parent=1 // pred_check
      _
    $region27: #{tpu_custom_call.1} parent=1 // pred_check_branch
      %33 = sbr.rel (0) target = $region29
    $region28: #{tpu_custom_call.1} parent=1 // pred_region
      _
    $region29: #{tpu_custom_call.1} parent=1 // pred_fallthru
      _
    // Predicated region
    $region30: #{tpu_custom_call.1} parent=1 // pred_check
      _
    $region31: #{tpu_custom_call.1} parent=1 // pred_check_branch
      %35 = sbr.rel (0) target = $region33
    $region32: #{tpu_custom_call.1} parent=1 // pred_region
      _
    $region33: #{tpu_custom_call.1} parent=1 // pred_fallthru
      _
    // Predicated region
    $region34: #{tpu_custom_call.1} parent=1 // pred_check
      _
    $region35: #{tpu_custom_call.1} parent=1 // pred_check_branch
      %37 = sbr.rel (0) target = $region37
    $region36: #{tpu_custom_call.1} parent=1 // pred_region
      _
    $region37: #{tpu_custom_call.1} parent=1 // pred_fallthru
      _
    // Predicated region
    $region38: #{tpu_custom_call.1} parent=1 // pred_check
      _
    $region39: #{tpu_custom_call.1} parent=1 // pred_check_branch
      %39 = sbr.rel (0) target = $region41
    $region40: #{tpu_custom_call.1} parent=1 // pred_region
      _
    $region41: #{tpu_custom_call.1} parent=1 // pred_fallthru
      _
    // Predicated region
    $region42: #{tpu_custom_call.1} parent=1 // pred_check
      _
    $region43: #{tpu_custom_call.1} parent=1 // pred_check_branch
      %41 = sbr.rel (0) target = $region45
    $region44: #{tpu_custom_call.1} parent=1 // pred_region
      _
    $region45: #{tpu_custom_call.1} parent=1 // pred_fallthru
      _
    // Predicated region
    $region46: #{tpu_custom_call.1} parent=1 // pred_check
      _
    $region47: #{tpu_custom_call.1} parent=1 // pred_check_branch
      %43 = sbr.rel (0) target = $region49
    $region48: #{tpu_custom_call.1} parent=1 // pred_region
      _
    $region49: #{tpu_custom_call.1} parent=1 // pred_fallthru
      _
    // Predicated region
    $region50: #{tpu_custom_call.1} parent=1 // pred_check
      _
    $region51: #{tpu_custom_call.1} parent=1 // pred_check_branch
      %45 = sbr.rel (0) target = $region53
    $region52: #{tpu_custom_call.1} parent=1 // pred_region
      _
    $region53: #{tpu_custom_call.1} parent=1 // pred_fallthru
      _
    // Predicated region
    $region54: #{tpu_custom_call.1} parent=1 // pred_check
      _
    $region55: #{tpu_custom_call.1} parent=1 // pred_check_branch
      %47 = sbr.rel (0) target = $region57
    $region56: #{tpu_custom_call.1} parent=1 // pred_region
      _
    $region57: #{tpu_custom_call.1} parent=1 // pred_fallthru
      _
    %v49 = vld [vmem:[%s0] sm:$0xff]
    %v50 = vld [vmem:[%s0 + $0x8] sm:$0xff]
    %v51 = vpack.c.bf16 %v50, %v49
    %v52 = vld [vmem:[%s1] sm:$0xff]
    %v53 = vld [vmem:[%s1 + $0x8] sm:$0xff]
    %v54 = vld [vmem:[%s2] sm:$0xf]
    %v55 = vld [vmem:[%s2 + $0x4] sm:$0xf]
    %v56 = vld [vmem:[%s2 + $0x8] sm:$0xf]
    %v57 = vld [vmem:[%s2 + $0xc] sm:$0xf]
    %v58 = vld [vmem:[%s2 + $0x10] sm:$0xf]
    %v59 = vld [vmem:[%s2 + $0x14] sm:$0xf]
    %v60 = vld [vmem:[%s2 + $0x18] sm:$0xf]
    %v61 = vld [vmem:[%s2 + $0x1c] sm:$0xf]
    %v62 = vld [vmem:[%s2 + $0x20] sm:$0xf]
    %v63 = vld [vmem:[%s2 + $0x24] sm:$0xf]
    %v64 = vld [vmem:[%s2 + $0x28] sm:$0xf]
    %v65 = vld [vmem:[%s2 + $0x2c] sm:$0xf]
    %v66 = vld [vmem:[%s2 + $0x30] sm:$0xf]
    %v67 = vld [vmem:[%s2 + $0x34] sm:$0xf]
    %v68 = vld [vmem:[%s2 + $0x38] sm:$0xf]
    %v69 = vld [vmem:[%s2 + $0x3c] sm:$0xf]
    %v86 = vunpack.c.l.b16 %v54
    %v87 = vunpack.c.l.b16 %v55
    %v88 = vunpack.c.l.b16 %v56
    %v89 = vunpack.c.l.b16 %v57
    %v90 = vunpack.c.l.b16 %v58
    %v91 = vunpack.c.l.b16 %v59
    %v92 = vunpack.c.l.b16 %v60
    %v93 = vunpack.c.l.b16 %v61
    %v94 = vunpack.c.l.b16 %v62
    %v95 = vunpack.c.l.b16 %v63
    %v96 = vunpack.c.l.b16 %v64
    %v97 = vunpack.c.l.b16 %v65
    %v98 = vunpack.c.l.b16 %v66
    %v99 = vunpack.c.l.b16 %v67
    %v100 = vunpack.c.l.b16 %v68
    %v101 = vunpack.c.l.b16 %v69
    %v102 = vpack.c.b16 %v87, %v86
    %v103 = vpack.c.b16 %v89, %v88
    %v104 = vpack.c.b16 %v91, %v90
    %v105 = vpack.c.b16 %v93, %v92
    %v106 = vpack.c.b16 %v95, %v94
    %v107 = vpack.c.b16 %v97, %v96
    %v108 = vpack.c.b16 %v99, %v98
    %v109 = vpack.c.b16 %v101, %v100
    %118 = vxpose.xlu0.c.b16.start [1/8] %v102, 128
    %119 = vxpose.xlu0.c.b16.cont [2/8] %v103, 128
    %120 = vxpose.xlu0.c.b16.cont [3/8] 0, 128
    %121 = vxpose.xlu0.c.b16.cont [4/8] 0, 128
    %122 = vxpose.xlu0.c.b16.cont [5/8] 0, 128
    %123 = vxpose.xlu0.c.b16.cont [6/8] 0, 128
    %124 = vxpose.xlu0.c.b16.cont [7/8] 0, 128
    %125 = vxpose.xlu0.c.b16.end [8/8] 0, 128
    %v126 = vpop.trf.xlu0
    %v127 = vpop.trf.xlu0
    %v128 = vpop.trf.xlu0
    %v129 = vpop.trf.xlu0
    %v130 = vpop.trf.xlu0
    %v131 = vpop.trf.xlu0
    %v132 = vpop.trf.xlu0
    %v133 = vpop.trf.xlu0
    %134 = vxpose.xlu0.c.b16.start [1/8] %v104, 128
    %135 = vxpose.xlu0.c.b16.cont [2/8] %v105, 128
    %136 = vxpose.xlu0.c.b16.cont [3/8] 0, 128
    %137 = vxpose.xlu0.c.b16.cont [4/8] 0, 128
    %138 = vxpose.xlu0.c.b16.cont [5/8] 0, 128
    %139 = vxpose.xlu0.c.b16.cont [6/8] 0, 128
    %140 = vxpose.xlu0.c.b16.cont [7/8] 0, 128
    %141 = vxpose.xlu0.c.b16.end [8/8] 0, 128
    %v142 = vpop.trf.xlu0
    %v143 = vpop.trf.xlu0
    %v144 = vpop.trf.xlu0
    %v145 = vpop.trf.xlu0
    %v146 = vpop.trf.xlu0
    %v147 = vpop.trf.xlu0
    %v148 = vpop.trf.xlu0
    %v149 = vpop.trf.xlu0
    %150 = vxpose.xlu0.c.b16.start [1/8] %v106, 128
    %151 = vxpose.xlu0.c.b16.cont [2/8] %v107, 128
    %152 = vxpose.xlu0.c.b16.cont [3/8] 0, 128
    %153 = vxpose.xlu0.c.b16.cont [4/8] 0, 128
    %154 = vxpose.xlu0.c.b16.cont [5/8] 0, 128
    %155 = vxpose.xlu0.c.b16.cont [6/8] 0, 128
    %156 = vxpose.xlu0.c.b16.cont [7/8] 0, 128
    %157 = vxpose.xlu0.c.b16.end [8/8] 0, 128
    %v158 = vpop.trf.xlu0
    %v159 = vpop.trf.xlu0
    %v160 = vpop.trf.xlu0
    %v161 = vpop.trf.xlu0
    %v162 = vpop.trf.xlu0
    %v163 = vpop.trf.xlu0
    %v164 = vpop.trf.xlu0
    %v165 = vpop.trf.xlu0
    %166 = vxpose.xlu0.c.b16.start [1/8] %v108, 128
    %167 = vxpose.xlu0.c.b16.cont [2/8] %v109, 128
    %168 = vxpose.xlu0.c.b16.cont [3/8] 0, 128
    %169 = vxpose.xlu0.c.b16.cont [4/8] 0, 128
    %170 = vxpose.xlu0.c.b16.cont [5/8] 0, 128
    %171 = vxpose.xlu0.c.b16.cont [6/8] 0, 128
    %172 = vxpose.xlu0.c.b16.cont [7/8] 0, 128
    %173 = vxpose.xlu0.c.b16.end [8/8] 0, 128
    %v174 = vpop.trf.xlu0
    %v175 = vpop.trf.xlu0
    %v176 = vpop.trf.xlu0
    %v177 = vpop.trf.xlu0
    %v178 = vpop.trf.xlu0
    %v179 = vpop.trf.xlu0
    %v180 = vpop.trf.xlu0
    %v181 = vpop.trf.xlu0
    %v190 = vunpack.c.l.b16 %v126
    %v191 = vunpack.c.h.b16 %v126
    %v192 = vunpack.c.l.b16 %v127
    %v193 = vunpack.c.l.b16 %v142
    %v194 = vunpack.c.h.b16 %v142
    %v195 = vunpack.c.l.b16 %v143
    %v196 = vunpack.c.l.b16 %v158
    %v197 = vunpack.c.h.b16 %v158
    %v198 = vunpack.c.l.b16 %v159
    %v199 = vunpack.c.l.b16 %v174
    %v200 = vunpack.c.h.b16 %v174
    %v201 = vunpack.c.l.b16 %v175
    %v202 = vpack.c.b16 %v191, %v190
    %v203 = vpack.c.b16 %v193, %v192
    %v204 = vpack.c.b16 %v195, %v194
    %v205 = vpack.c.b16 %v197, %v196
    %v206 = vpack.c.b16 %v199, %v198
    %v207 = vpack.c.b16 %v201, %v200
    %vm208 = vcmask 261120
    %v210 = vsel %vm208, %v202, 0
    %v213 = vsel %vm208, %v203, 0
    %v216 = vsel %vm208, %v204, 0
    %v219 = vsel %vm208, %v205, 0
    %v222 = vsel %vm208, %v206, 0
    %v225 = vsel %vm208, %v207, 0
    %v228 = vsel %vm208, %v51, 0
    %230 = vmatpush.bf16.xpose.msra.mxu0 0
    %231 = vmatpush.bf16.xpose.msra.mxu0 0
    %232 = vmatpush.bf16.xpose.msra.mxu0 0
    %233 = vmatpush.bf16.xpose.msra.mxu0 0
    %234 = vmatpush.bf16.xpose.msra.mxu0 0
    %235 = vmatpush.bf16.xpose.msra.mxu0 0
    %236 = vmatpush.bf16.xpose.msra.mxu0 0
    %237 = vmatpush.bf16.xpose.msra.mxu0 %v228
    %238 = vmatmul.bf16.gmra.mxu0 %v210
    %v239 = vpop.f32.mrf.mxu0
    %v240 = vadd.f32 0.0, %v239
    %v241 = vpop.f32.mrf.mxu0
    %v242 = vadd.f32 0.0, %v241
    %243 = vmatmul.bf16.gmra.mxu0 %v213
    %v244 = vpop.f32.mrf.mxu0
    %v245 = vadd.f32 0.0, %v244
    %v246 = vpop.f32.mrf.mxu0
    %v247 = vadd.f32 0.0, %v246
    %248 = vmatmul.bf16.gmra.mxu0 %v216
    %v249 = vpop.f32.mrf.mxu0
    %v250 = vadd.f32 0.0, %v249
    %v251 = vpop.f32.mrf.mxu0
    %v252 = vadd.f32 0.0, %v251
    %253 = vmatmul.bf16.gmra.mxu0 %v219
    %v254 = vpop.f32.mrf.mxu0
    %v255 = vadd.f32 0.0, %v254
    %v256 = vpop.f32.mrf.mxu0
    %v257 = vadd.f32 0.0, %v256
    %258 = vmatmul.bf16.gmra.mxu0 %v222
    %v259 = vpop.f32.mrf.mxu0
    %v260 = vadd.f32 0.0, %v259
    %v261 = vpop.f32.mrf.mxu0
    %v262 = vadd.f32 0.0, %v261
    %263 = vmatmul.bf16.gmra.mxu0 %v225
    %v264 = vpop.f32.mrf.mxu0
    %v265 = vadd.f32 0.0, %v264
    %v266 = vpop.f32.mrf.mxu0
    %v267 = vadd.f32 0.0, %v266
    %268 = vdwg.mxu0
    %269 = vxpose.xlu0.b32.start [1/16] %v240, 128
    %270 = vxpose.xlu0.b32.cont [2/16] %v242, 128
    %271 = vxpose.xlu0.b32.cont [3/16] %v245, 128
    %272 = vxpose.xlu0.b32.cont [4/16] 0.0, 128
    %273 = vxpose.xlu0.b32.cont [5/16] 0.0, 128
    %274 = vxpose.xlu0.b32.cont [6/16] 0.0, 128
    %275 = vxpose.xlu0.b32.cont [7/16] 0.0, 128
    %276 = vxpose.xlu0.b32.cont [8/16] 0.0, 128
    %277 = vxpose.xlu0.b32.cont [9/16] 0.0, 128
    %278 = vxpose.xlu0.b32.cont [10/16] 0.0, 128
    %279 = vxpose.xlu0.b32.cont [11/16] 0.0, 128
    %280 = vxpose.xlu0.b32.cont [12/16] 0.0, 128
    %281 = vxpose.xlu0.b32.cont [13/16] 0.0, 128
    %282 = vxpose.xlu0.b32.cont [14/16] 0.0, 128
    %283 = vxpose.xlu0.b32.cont [15/16] 0.0, 128
    %284 = vxpose.xlu0.b32.end [16/16] 0.0, 128
    %v285 = vpop.trf.xlu0
    %v286 = vpop.trf.xlu0
    %v287 = vpop.trf.xlu0
    %v288 = vpop.trf.xlu0
    %v289 = vpop.trf.xlu0
    %v290 = vpop.trf.xlu0
    %v291 = vpop.trf.xlu0
    %v292 = vpop.trf.xlu0
    %v293 = vpop.trf.xlu0
    %v294 = vpop.trf.xlu0
    %v295 = vpop.trf.xlu0
    %v296 = vpop.trf.xlu0
    %v297 = vpop.trf.xlu0
    %v298 = vpop.trf.xlu0
    %v299 = vpop.trf.xlu0
    %v300 = vpop.trf.xlu0
    %301 = vxpose.xlu0.b32.start [1/16] %v247, 128
    %302 = vxpose.xlu0.b32.cont [2/16] %v250, 128
    %303 = vxpose.xlu0.b32.cont [3/16] %v252, 128
    %304 = vxpose.xlu0.b32.cont [4/16] 0.0, 128
    %305 = vxpose.xlu0.b32.cont [5/16] 0.0, 128
    %306 = vxpose.xlu0.b32.cont [6/16] 0.0, 128
    %307 = vxpose.xlu0.b32.cont [7/16] 0.0, 128
    %308 = vxpose.xlu0.b32.cont [8/16] 0.0, 128
    %309 = vxpose.xlu0.b32.cont [9/16] 0.0, 128
    %310 = vxpose.xlu0.b32.cont [10/16] 0.0, 128
    %311 = vxpose.xlu0.b32.cont [11/16] 0.0, 128
    %312 = vxpose.xlu0.b32.cont [12/16] 0.0, 128
    %313 = vxpose.xlu0.b32.cont [13/16] 0.0, 128
    %314 = vxpose.xlu0.b32.cont [14/16] 0.0, 128
    %315 = vxpose.xlu0.b32.cont [15/16] 0.0, 128
    %316 = vxpose.xlu0.b32.end [16/16] 0.0, 128
    %v317 = vpop.trf.xlu0
    %v318 = vpop.trf.xlu0
    %v319 = vpop.trf.xlu0
    %v320 = vpop.trf.xlu0
    %v321 = vpop.trf.xlu0
    %v322 = vpop.trf.xlu0
    %v323 = vpop.trf.xlu0
    %v324 = vpop.trf.xlu0
    %v325 = vpop.trf.xlu0
    %v326 = vpop.trf.xlu0
    %v327 = vpop.trf.xlu0
    %v328 = vpop.trf.xlu0
    %v329 = vpop.trf.xlu0
    %v330 = vpop.trf.xlu0
    %v331 = vpop.trf.xlu0
    %v332 = vpop.trf.xlu0
    %333 = vxpose.xlu0.b32.start [1/16] %v255, 128
    %334 = vxpose.xlu0.b32.cont [2/16] %v257, 128
    %335 = vxpose.xlu0.b32.cont [3/16] %v260, 128
    %336 = vxpose.xlu0.b32.cont [4/16] 0.0, 128
    %337 = vxpose.xlu0.b32.cont [5/16] 0.0, 128
    %338 = vxpose.xlu0.b32.cont [6/16] 0.0, 128
    %339 = vxpose.xlu0.b32.cont [7/16] 0.0, 128
    %340 = vxpose.xlu0.b32.cont [8/16] 0.0, 128
    %341 = vxpose.xlu0.b32.cont [9/16] 0.0, 128
    %342 = vxpose.xlu0.b32.cont [10/16] 0.0, 128
    %343 = vxpose.xlu0.b32.cont [11/16] 0.0, 128
    %344 = vxpose.xlu0.b32.cont [12/16] 0.0, 128
    %345 = vxpose.xlu0.b32.cont [13/16] 0.0, 128
    %346 = vxpose.xlu0.b32.cont [14/16] 0.0, 128
    %347 = vxpose.xlu0.b32.cont [15/16] 0.0, 128
    %348 = vxpose.xlu0.b32.end [16/16] 0.0, 128
    %v349 = vpop.trf.xlu0
    %v350 = vpop.trf.xlu0
    %v351 = vpop.trf.xlu0
    %v352 = vpop.trf.xlu0
    %v353 = vpop.trf.xlu0
    %v354 = vpop.trf.xlu0
    %v355 = vpop.trf.xlu0
    %v356 = vpop.trf.xlu0
    %v357 = vpop.trf.xlu0
    %v358 = vpop.trf.xlu0
    %v359 = vpop.trf.xlu0
    %v360 = vpop.trf.xlu0
    %v361 = vpop.trf.xlu0
    %v362 = vpop.trf.xlu0
    %v363 = vpop.trf.xlu0
    %v364 = vpop.trf.xlu0
    %365 = vxpose.xlu0.b32.start [1/16] %v262, 128
    %366 = vxpose.xlu0.b32.cont [2/16] %v265, 128
    %367 = vxpose.xlu0.b32.cont [3/16] %v267, 128
    %368 = vxpose.xlu0.b32.cont [4/16] 0.0, 128
    %369 = vxpose.xlu0.b32.cont [5/16] 0.0, 128
    %370 = vxpose.xlu0.b32.cont [6/16] 0.0, 128
    %371 = vxpose.xlu0.b32.cont [7/16] 0.0, 128
    %372 = vxpose.xlu0.b32.cont [8/16] 0.0, 128
    %373 = vxpose.xlu0.b32.cont [9/16] 0.0, 128
    %374 = vxpose.xlu0.b32.cont [10/16] 0.0, 128
    %375 = vxpose.xlu0.b32.cont [11/16] 0.0, 128
    %376 = vxpose.xlu0.b32.cont [12/16] 0.0, 128
    %377 = vxpose.xlu0.b32.cont [13/16] 0.0, 128
    %378 = vxpose.xlu0.b32.cont [14/16] 0.0, 128
    %379 = vxpose.xlu0.b32.cont [15/16] 0.0, 128
    %380 = vxpose.xlu0.b32.end [16/16] 0.0, 128
    %v381 = vpop.trf.xlu0
    %v382 = vpop.trf.xlu0
    %v383 = vpop.trf.xlu0
    %v384 = vpop.trf.xlu0
    %v385 = vpop.trf.xlu0
    %v386 = vpop.trf.xlu0
    %v387 = vpop.trf.xlu0
    %v388 = vpop.trf.xlu0
    %v389 = vpop.trf.xlu0
    %v390 = vpop.trf.xlu0
    %v391 = vpop.trf.xlu0
    %v392 = vpop.trf.xlu0
    %v393 = vpop.trf.xlu0
    %v394 = vpop.trf.xlu0
    %v395 = vpop.trf.xlu0
    %v396 = vpop.trf.xlu0
    %v397 = vld [vmem:[%s3] sm:$0x1]
    %v398 = vld [vmem:[%s3 + $0x1] sm:$0x1]
    %v399 = vld [vmem:[%s3 + $0x2] sm:$0x1]
    %v400 = vld [vmem:[%s3 + $0x3] sm:$0x1]
    %v405 = vperm.slane %v397, 0
    %v406 = vperm.slane %v398, 0
    %v407 = vperm.slane %v399, 0
    %v408 = vperm.slane %v400, 0
    %v413 = vadd.f32 %v285, %v405
    %v414 = vadd.f32 %v286, %v405
    %v415 = vadd.f32 %v317, %v406
    %v416 = vadd.f32 %v318, %v406
    %v417 = vadd.f32 %v349, %v407
    %v418 = vadd.f32 %v350, %v407
    %v419 = vadd.f32 %v381, %v408
    %v420 = vadd.f32 %v382, %v408
    %v421 = vpack.c.bf16 %v413, %v413
    %v422 = vpack.c.bf16 %v414, %v414
    %v423 = vpack.c.bf16 %v415, %v415
    %v424 = vpack.c.bf16 %v416, %v416
    %v425 = vpack.c.bf16 %v417, %v417
    %v426 = vpack.c.bf16 %v418, %v418
    %v427 = vpack.c.bf16 %v419, %v419
    %v428 = vpack.c.bf16 %v420, %v420
    %v431 = vunpack.c.l.b16 %v421
    %v432 = vunpack.c.l.b16 %v422
    %v433 = vpack.c.b16 %v432, %v431
    %434 = vrot.lane.b32.xlu0 %v433, 120
    %v435 = vpop.permute.xlu0 %434
    %vm436 = vcmask 64512
    %v438 = vsel %vm436, %v433, 0
    %v441 = vsel %vm436, %v435, 0
    %443 = vmatpush.bf16.xpose.msra.mxu0 0
    %444 = vmatpush.bf16.xpose.msra.mxu0 0
    %445 = vmatpush.bf16.xpose.msra.mxu0 0
    %446 = vmatpush.bf16.xpose.msra.mxu0 0
    %447 = vmatpush.bf16.xpose.msra.mxu0 0
    %448 = vmatpush.bf16.xpose.msra.mxu0 0
    %449 = vmatpush.bf16.xpose.msra.mxu0 0
    %450 = vmatpush.bf16.xpose.msra.mxu0 %v441
    %451 = vmatmul.bf16.gmra.mxu0 %v438
    %v452 = vpop.f32.mrf.mxu0
    %v453 = vadd.f32 %v52, %v452
    %v454 = vpop.f32.mrf.mxu0
    %v455 = vadd.f32 %v53, %v454
    %456 = vdwg.mxu0
    %v459 = vunpack.c.l.b16 %v423
    %v460 = vunpack.c.l.b16 %v424
    %v461 = vpack.c.b16 %v460, %v459
    %462 = vrot.lane.b32.xlu0 %v461, 120
    %v463 = vpop.permute.xlu0 %462
    %v465 = vsel %vm436, %v461, 0
    %v468 = vsel %vm436, %v463, 0
    %470 = vmatpush.bf16.xpose.msra.mxu0 0
    %471 = vmatpush.bf16.xpose.msra.mxu0 0
    %472 = vmatpush.bf16.xpose.msra.mxu0 0
    %473 = vmatpush.bf16.xpose.msra.mxu0 0
    %474 = vmatpush.bf16.xpose.msra.mxu0 0
    %475 = vmatpush.bf16.xpose.msra.mxu0 0
    %476 = vmatpush.bf16.xpose.msra.mxu0 0
    %477 = vmatpush.bf16.xpose.msra.mxu0 %v468
    %478 = vmatmul.bf16.gmra.mxu0 %v465
    %v479 = vpop.f32.mrf.mxu0
    %v480 = vadd.f32 %v52, %v479
    %v481 = vpop.f32.mrf.mxu0
    %v482 = vadd.f32 %v53, %v481
    %483 = vdwg.mxu0
    %v486 = vunpack.c.l.b16 %v425
    %v487 = vunpack.c.l.b16 %v426
    %v488 = vpack.c.b16 %v487, %v486
    %489 = vrot.lane.b32.xlu0 %v488, 120
    %v490 = vpop.permute.xlu0 %489
    %v492 = vsel %vm436, %v488, 0
    %v495 = vsel %vm436, %v490, 0
    %497 = vmatpush.bf16.xpose.msra.mxu0 0
    %498 = vmatpush.bf16.xpose.msra.mxu0 0
    %499 = vmatpush.bf16.xpose.msra.mxu0 0
    %500 = vmatpush.bf16.xpose.msra.mxu0 0
    %501 = vmatpush.bf16.xpose.msra.mxu0 0
    %502 = vmatpush.bf16.xpose.msra.mxu0 0
    %503 = vmatpush.bf16.xpose.msra.mxu0 0
    %504 = vmatpush.bf16.xpose.msra.mxu0 %v495
    %505 = vmatmul.bf16.gmra.mxu0 %v492
    %v506 = vpop.f32.mrf.mxu0
    %v507 = vadd.f32 %v52, %v506
    %v508 = vpop.f32.mrf.mxu0
    %v509 = vadd.f32 %v53, %v508
    %510 = vdwg.mxu0
    %v513 = vunpack.c.l.b16 %v427
    %v514 = vunpack.c.l.b16 %v428
    %v515 = vpack.c.b16 %v514, %v513
    %516 = vrot.lane.b32.xlu0 %v515, 120
    %v517 = vpop.permute.xlu0 %516
    %v519 = vsel %vm436, %v515, 0
    %v522 = vsel %vm436, %v517, 0
    %524 = vmatpush.bf16.xpose.msra.mxu0 0
    %525 = vmatpush.bf16.xpose.msra.mxu0 0
    %526 = vmatpush.bf16.xpose.msra.mxu0 0
    %527 = vmatpush.bf16.xpose.msra.mxu0 0
    %528 = vmatpush.bf16.xpose.msra.mxu0 0
    %529 = vmatpush.bf16.xpose.msra.mxu0 0
    %530 = vmatpush.bf16.xpose.msra.mxu0 0
    %531 = vmatpush.bf16.xpose.msra.mxu0 %v522
    %532 = vmatmul.bf16.gmra.mxu0 %v519
    %v533 = vpop.f32.mrf.mxu0
    %v534 = vadd.f32 %v52, %v533
    %v535 = vpop.f32.mrf.mxu0
    %v536 = vadd.f32 %v53, %v535
    %537 = vdwg.mxu0
    %vm538 = vcmask 130048
    %v539 = vsel %vm538, %v453, -inf
    %540 = vmax.xlane.f32.xlu0 %v539
    %v541 = vpop.xlane.xlu0 %540
    %v542 = vsel %vm538, %v455, -inf
    %543 = vmax.xlane.f32.xlu0 %v542
    %v544 = vpop.xlane.xlu0 %543
    %v545 = vsel %vm538, %v480, -inf
    %546 = vmax.xlane.f32.xlu0 %v545
    %v547 = vpop.xlane.xlu0 %546
    %v548 = vsel %vm538, %v482, -inf
    %549 = vmax.xlane.f32.xlu0 %v548
    %v550 = vpop.xlane.xlu0 %549
    %v551 = vsel %vm538, %v507, -inf
    %552 = vmax.xlane.f32.xlu0 %v551
    %v553 = vpop.xlane.xlu0 %552
    %v554 = vsel %vm538, %v509, -inf
    %555 = vmax.xlane.f32.xlu0 %v554
    %v556 = vpop.xlane.xlu0 %555
    %v557 = vsel %vm538, %v534, -inf
    %558 = vmax.xlane.f32.xlu0 %v557
    %v559 = vpop.xlane.xlu0 %558
    %v560 = vsel %vm538, %v536, -inf
    %561 = vmax.xlane.f32.xlu0 %v560
    %v562 = vpop.xlane.xlu0 %561
    %v563 = vsub.f32 %v453, %v541
    %v564 = vsub.f32 %v455, %v544
    %v565 = vsub.f32 %v480, %v547
    %v566 = vsub.f32 %v482, %v550
    %v567 = vsub.f32 %v507, %v553
    %v568 = vsub.f32 %v509, %v556
    %v569 = vsub.f32 %v534, %v559
    %v570 = vsub.f32 %v536, %v562
    %v571 = vmul.f32 %v563, 1.442695
    %v572 = vpow.pop %v571
    %v573 = vmul.f32 %v564, 1.442695
    %v574 = vpow.pop %v573
    %v575 = vmul.f32 %v565, 1.442695
    %v576 = vpow.pop %v575
    %v577 = vmul.f32 %v566, 1.442695
    %v578 = vpow.pop %v577
    %v579 = vmul.f32 %v567, 1.442695
    %v580 = vpow.pop %v579
    %v581 = vmul.f32 %v568, 1.442695
    %v582 = vpow.pop %v581
    %v583 = vmul.f32 %v569, 1.442695
    %v584 = vpow.pop %v583
    %v585 = vmul.f32 %v570, 1.442695
    %v586 = vpow.pop %v585
    %v587 = vsel %vm538, %v572, 0.0
    %588 = vadd.xlane.f32.xlu0 %v587
    %v589 = vpop.xlane.xlu0 %588
    %v590 = vsel %vm538, %v574, 0.0
    %591 = vadd.xlane.f32.xlu0 %v590
    %v592 = vpop.xlane.xlu0 %591
    %v593 = vsel %vm538, %v576, 0.0
    %594 = vadd.xlane.f32.xlu0 %v593
    %v595 = vpop.xlane.xlu0 %594
    %v596 = vsel %vm538, %v578, 0.0
    %597 = vadd.xlane.f32.xlu0 %v596
    %v598 = vpop.xlane.xlu0 %597
    %v599 = vsel %vm538, %v580, 0.0
    %600 = vadd.xlane.f32.xlu0 %v599
    %v601 = vpop.xlane.xlu0 %600
    %v602 = vsel %vm538, %v582, 0.0
    %603 = vadd.xlane.f32.xlu0 %v602
    %v604 = vpop.xlane.xlu0 %603
    %v605 = vsel %vm538, %v584, 0.0
    %606 = vadd.xlane.f32.xlu0 %v605
    %v607 = vpop.xlane.xlu0 %606
    %v608 = vsel %vm538, %v586, 0.0
    %609 = vadd.xlane.f32.xlu0 %v608
    %v610 = vpop.xlane.xlu0 %609
    %v611 = vrcp.pop %v589
    %v612 = vrcp.pop %v592
    %v613 = vrcp.pop %v595
    %v614 = vrcp.pop %v598
    %v615 = vrcp.pop %v601
    %v616 = vrcp.pop %v604
    %v617 = vrcp.pop %v607
    %v618 = vrcp.pop %v610
    %v619 = vmul.f32 %v572, %v611
    %v620 = vmul.f32 %v574, %v612
    %v621 = vmul.f32 %v576, %v613
    %v622 = vmul.f32 %v578, %v614
    %v623 = vmul.f32 %v580, %v615
    %v624 = vmul.f32 %v582, %v616
    %v625 = vmul.f32 %v584, %v617
    %v626 = vmul.f32 %v586, %v618
    %v627 = vpack.c.bf16 %v619, %v619
    %v628 = vpack.c.bf16 %v620, %v620
    %v629 = vpack.c.bf16 %v621, %v621
    %v630 = vpack.c.bf16 %v622, %v622
    %v631 = vpack.c.bf16 %v623, %v623
    %v632 = vpack.c.bf16 %v624, %v624
    %v633 = vpack.c.bf16 %v625, %v625
    %v634 = vpack.c.bf16 %v626, %v626
    %v637 = vunpack.c.l.b16 %v627
    %v638 = vunpack.c.l.b16 %v628
    %v639 = vpack.c.b16 %v638, %v637
    %640 = vrot.lane.b32.xlu0 %v433, 112
    %v641 = vpop.permute.xlu0 %640
    %v644 = vsel %vm538, %v639, 0
    %646 = vmatpush.bf16.msra.mxu0 0
    %647 = vmatpush.bf16.msra.mxu0 0
    %648 = vmatpush.bf16.msra.mxu0 0
    %649 = vmatpush.bf16.msra.mxu0 0
    %650 = vmatpush.bf16.msra.mxu0 0
    %651 = vmatpush.bf16.msra.mxu0 0
    %652 = vmatpush.bf16.msra.mxu0 0
    %653 = vmatpush.bf16.msra.mxu0 %v641
    %654 = vmatmul.bf16.gmra.mxu0 %v644
    %v655 = vpop.f32.mrf.mxu0
    %v656 = vadd.f32 0.0, %v655
    %v657 = vpop.f32.mrf.mxu0
    %v658 = vadd.f32 0.0, %v657
    %659 = vdwg.mxu0
    %v662 = vunpack.c.l.b16 %v629
    %v663 = vunpack.c.l.b16 %v630
    %v664 = vpack.c.b16 %v663, %v662
    %665 = vrot.lane.b32.xlu0 %v461, 112
    %v666 = vpop.permute.xlu0 %665
    %v669 = vsel %vm538, %v664, 0
    %671 = vmatpush.bf16.msra.mxu0 0
    %672 = vmatpush.bf16.msra.mxu0 0
    %673 = vmatpush.bf16.msra.mxu0 0
    %674 = vmatpush.bf16.msra.mxu0 0
    %675 = vmatpush.bf16.msra.mxu0 0
    %676 = vmatpush.bf16.msra.mxu0 0
    %677 = vmatpush.bf16.msra.mxu0 0
    %678 = vmatpush.bf16.msra.mxu0 %v666
    %679 = vmatmul.bf16.gmra.mxu0 %v669
    %v680 = vpop.f32.mrf.mxu0
    %v681 = vadd.f32 0.0, %v680
    %v682 = vpop.f32.mrf.mxu0
    %v683 = vadd.f32 0.0, %v682
    %684 = vdwg.mxu0
    %v687 = vunpack.c.l.b16 %v631
    %v688 = vunpack.c.l.b16 %v632
    %v689 = vpack.c.b16 %v688, %v687
    %690 = vrot.lane.b32.xlu0 %v488, 112
    %v691 = vpop.permute.xlu0 %690
    %v694 = vsel %vm538, %v689, 0
    %696 = vmatpush.bf16.msra.mxu0 0
    %697 = vmatpush.bf16.msra.mxu0 0
    %698 = vmatpush.bf16.msra.mxu0 0
    %699 = vmatpush.bf16.msra.mxu0 0
    %700 = vmatpush.bf16.msra.mxu0 0
    %701 = vmatpush.bf16.msra.mxu0 0
    %702 = vmatpush.bf16.msra.mxu0 0
    %703 = vmatpush.bf16.msra.mxu0 %v691
    %704 = vmatmul.bf16.gmra.mxu0 %v694
    %v705 = vpop.f32.mrf.mxu0
    %v706 = vadd.f32 0.0, %v705
    %v707 = vpop.f32.mrf.mxu0
    %v708 = vadd.f32 0.0, %v707
    %709 = vdwg.mxu0
    %v712 = vunpack.c.l.b16 %v633
    %v713 = vunpack.c.l.b16 %v634
    %v714 = vpack.c.b16 %v713, %v712
    %715 = vrot.lane.b32.xlu0 %v515, 112
    %v716 = vpop.permute.xlu0 %715
    %v719 = vsel %vm538, %v714, 0
    %721 = vmatpush.bf16.msra.mxu0 0
    %722 = vmatpush.bf16.msra.mxu0 0
    %723 = vmatpush.bf16.msra.mxu0 0
    %724 = vmatpush.bf16.msra.mxu0 0
    %725 = vmatpush.bf16.msra.mxu0 0
    %726 = vmatpush.bf16.msra.mxu0 0
    %727 = vmatpush.bf16.msra.mxu0 0
    %728 = vmatpush.bf16.msra.mxu0 %v716
    %729 = vmatmul.bf16.gmra.mxu0 %v719
    %v730 = vpop.f32.mrf.mxu0
    %v731 = vadd.f32 0.0, %v730
    %v732 = vpop.f32.mrf.mxu0
    %v733 = vadd.f32 0.0, %v732
    %734 = vdwg.mxu0
    %v735 = vpack.c.bf16 %v656, %v656
    %v736 = vpack.c.bf16 %v658, %v658
    %v737 = vpack.c.bf16 %v681, %v681
    %v738 = vpack.c.bf16 %v683, %v683
    %v739 = vpack.c.bf16 %v706, %v706
    %v740 = vpack.c.bf16 %v708, %v708
    %v741 = vpack.c.bf16 %v731, %v731
    %v742 = vpack.c.bf16 %v733, %v733
    %v743 = vld [vmem:[%s4] sm:$0xf]
    %v744 = vld [vmem:[%s4 + $0x4] sm:$0xf]
    %v745 = vld [vmem:[%s4 + $0x8] sm:$0xf]
    %v746 = vld [vmem:[%s4 + $0xc] sm:$0xf]
    %v749 = vunpack.c.l.b16 %v735
    %v750 = vunpack.c.l.b16 %v736
    %v751 = vpack.c.b16 %v750, %v749
    %v753 = vsel %vm436, %v751, 0
    %vm755 = vcmask 1043456
    %v757 = vsel %vm755, %v743, 0
    %759 = vmatpush.bf16.msra.mxu0 0
    %760 = vmatpush.bf16.msra.mxu0 0
    %761 = vmatpush.bf16.msra.mxu0 0
    %762 = vmatpush.bf16.msra.mxu0 0
    %763 = vmatpush.bf16.msra.mxu0 0
    %764 = vmatpush.bf16.msra.mxu0 0
    %765 = vmatpush.bf16.msra.mxu0 0
    %766 = vmatpush.bf16.msra.mxu0 %v757
    %767 = vmatmul.bf16.gmra.mxu0 %v753
    %v768 = vpop.f32.mrf.mxu0
    %v769 = vadd.f32 0.0, %v768
    %v770 = vpop.f32.mrf.mxu0
    %v771 = vadd.f32 0.0, %v770
    %772 = vdwg.mxu0
    %v775 = vunpack.c.l.b16 %v737
    %v776 = vunpack.c.l.b16 %v738
    %v777 = vpack.c.b16 %v776, %v775
    %v779 = vsel %vm436, %v777, 0
    %v782 = vsel %vm755, %v744, 0
    %784 = vmatpush.bf16.msra.mxu0 0
    %785 = vmatpush.bf16.msra.mxu0 0
    %786 = vmatpush.bf16.msra.mxu0 0
    %787 = vmatpush.bf16.msra.mxu0 0
    %788 = vmatpush.bf16.msra.mxu0 0
    %789 = vmatpush.bf16.msra.mxu0 0
    %790 = vmatpush.bf16.msra.mxu0 0
    %791 = vmatpush.bf16.msra.mxu0 %v782
    %792 = vmatmul.bf16.gmra.mxu0 %v779
    %v793 = vpop.f32.mrf.mxu0
    %v794 = vadd.f32 0.0, %v793
    %v795 = vpop.f32.mrf.mxu0
    %v796 = vadd.f32 0.0, %v795
    %797 = vdwg.mxu0
    %v800 = vunpack.c.l.b16 %v739
    %v801 = vunpack.c.l.b16 %v740
    %v802 = vpack.c.b16 %v801, %v800
    %v804 = vsel %vm436, %v802, 0
    %v807 = vsel %vm755, %v745, 0
    %809 = vmatpush.bf16.msra.mxu0 0
    %810 = vmatpush.bf16.msra.mxu0 0
    %811 = vmatpush.bf16.msra.mxu0 0
    %812 = vmatpush.bf16.msra.mxu0 0
    %813 = vmatpush.bf16.msra.mxu0 0
    %814 = vmatpush.bf16.msra.mxu0 0
    %815 = vmatpush.bf16.msra.mxu0 0
    %816 = vmatpush.bf16.msra.mxu0 %v807
    %817 = vmatmul.bf16.gmra.mxu0 %v804
    %v818 = vpop.f32.mrf.mxu0
    %v819 = vadd.f32 0.0, %v818
    %v820 = vpop.f32.mrf.mxu0
    %v821 = vadd.f32 0.0, %v820
    %822 = vdwg.mxu0
    %v825 = vunpack.c.l.b16 %v741
    %v826 = vunpack.c.l.b16 %v742
    %v827 = vpack.c.b16 %v826, %v825
    %v829 = vsel %vm436, %v827, 0
    %v832 = vsel %vm755, %v746, 0
    %834 = vmatpush.bf16.msra.mxu0 0
    %835 = vmatpush.bf16.msra.mxu0 0
    %836 = vmatpush.bf16.msra.mxu0 0
    %837 = vmatpush.bf16.msra.mxu0 0
    %838 = vmatpush.bf16.msra.mxu0 0
    %839 = vmatpush.bf16.msra.mxu0 0
    %840 = vmatpush.bf16.msra.mxu0 0
    %841 = vmatpush.bf16.msra.mxu0 %v832
    %842 = vmatmul.bf16.gmra.mxu0 %v829
    %v843 = vpop.f32.mrf.mxu0
    %v844 = vadd.f32 0.0, %v843
    %v845 = vpop.f32.mrf.mxu0
    %v846 = vadd.f32 0.0, %v845
    %847 = vdwg.mxu0
    %v848 = vsel %vm208, %v769, 0.0
    %v849 = vsel %vm208, %v794, 0.0
    %v850 = vadd.f32 %v848, %v849
    %v851 = vsel %vm208, %v819, 0.0
    %v852 = vadd.f32 %v850, %v851
    %v853 = vsel %vm208, %v844, 0.0
    %v854 = vadd.f32 %v852, %v853
    %v855 = vsel %vm208, %v771, 0.0
    %v856 = vsel %vm208, %v796, 0.0
    %v857 = vadd.f32 %v855, %v856
    %v858 = vsel %vm208, %v821, 0.0
    %v859 = vadd.f32 %v857, %v858
    %v860 = vsel %vm208, %v846, 0.0
    %v861 = vadd.f32 %v859, %v860
    %v862 = vld [vmem:[%s5] sm:$0x1]
    %v864 = vperm.slane %v862, 0
    %v866 = vadd.f32 %v854, %v864
    %v867 = vadd.f32 %v861, %v864
    %v868 = vadd.f32 %v49, %v866
    %v869 = vadd.f32 %v50, %v867
    %v870 = vsel %vm208, %v868, 0.0
    %871 = vadd.xlane.f32.xlu0 %v870
    %v872 = vpop.xlane.xlu0 %871
    %v873 = vsel %vm208, %v869, 0.0
    %874 = vadd.xlane.f32.xlu0 %v873
    %v875 = vpop.xlane.xlu0 %874
    %v876 = vrcp.pop 32.0
    %v877 = vmul.f32 32.0, %v876
    %v878 = vsub.f32 1.0, %v877
    %v879 = vmul.f32 %v876, %v878
    %v880 = vadd.f32 %v876, %v879
    %vm881 = vweird.f32 %v876
    %v882 = vsel %vm881, %v876, %v880
    %v883 = vmul.f32 %v872, %v882
    %v884 = vmul.f32 %v875, %v882
    %v885 = vsub.f32 %v868, %v883
    %v886 = vsub.f32 %v869, %v884
    %v887 = vmul.f32 %v885, %v885
    %v888 = vmul.f32 %v886, %v886
    %v889 = vsel %vm208, %v887, 0.0
    %890 = vadd.xlane.f32.xlu0 %v889
    %v891 = vpop.xlane.xlu0 %890
    %v892 = vsel %vm208, %v888, 0.0
    %893 = vadd.xlane.f32.xlu0 %v892
    %v894 = vpop.xlane.xlu0 %893
    %v895 = vmul.f32 %v891, %v882
    %v896 = vmul.f32 %v894, %v882
    %v897 = vadd.f32 %v895, 1e-05
    %v898 = vadd.f32 %v896, 1e-05
    %v899 = vrsqrt.pop %v897
    %v900 = vmul.f32 %v899, %v897
    %v901 = vmul.f32 %v900, %v899
    %v902 = vmul.f32 0.5, %v901
    %v903 = vsub.f32 1.5, %v902
    %v904 = vmul.f32 %v899, %v903
    %vm905 = vweird.f32 %v897
    %vm906 = vweird.f32 %v899
    %vm907 = vmor %vm905, %vm906
    %v908 = vsel %vm907, %v899, %v904
    %v909 = vrsqrt.pop %v898
    %v910 = vmul.f32 %v909, %v898
    %v911 = vmul.f32 %v910, %v909
    %v912 = vmul.f32 0.5, %v911
    %v913 = vsub.f32 1.5, %v912
    %v914 = vmul.f32 %v909, %v913
    %vm915 = vweird.f32 %v898
    %vm916 = vweird.f32 %v909
    %vm917 = vmor %vm915, %vm916
    %v918 = vsel %vm917, %v909, %v914
    %v919 = vmul.f32 %v885, %v908
    %v920 = vmul.f32 %v886, %v918
    %v921 = vld [vmem:[%s10] sm:$0x1]
    %v923 = vperm.slane %v921, 0
    %v925 = vmul.f32 %v919, %v923
    %v926 = vmul.f32 %v920, %v923
    %v927 = vld [vmem:[%s11] sm:$0x1]
    %v929 = vperm.slane %v927, 0
    %v931 = vadd.f32 %v925, %v929
    %v932 = vadd.f32 %v926, %v929
    %v933 = vpack.c.bf16 %v932, %v931
    %v934 = vld [vmem:[%s6] sm:$0xf]
    %v935 = vld [vmem:[%s6 + $0x4] sm:$0xf]
    %v936 = vld [vmem:[%s6 + $0x8] sm:$0xf]
    %v937 = vld [vmem:[%s6 + $0xc] sm:$0xf]
    %v938 = vld [vmem:[%s7] sm:$0x1]
    %v940 = vperm.slane %v938, 0
    %v946 = vunpack.c.l.b16 %v934
    %v947 = vunpack.c.l.b16 %v935
    %v948 = vunpack.c.l.b16 %v936
    %v949 = vunpack.c.l.b16 %v937
    %v950 = vpack.c.b16 %v947, %v946
    %v951 = vpack.c.b16 %v949, %v948
    %v955 = vsel %vm208, %v933, 0
    %957 = vmatpush.bf16.msra.mxu0 0
    %958 = vmatpush.bf16.msra.mxu0 0
    %959 = vmatpush.bf16.msra.mxu0 0
    %960 = vmatpush.bf16.msra.mxu0 0
    %961 = vmatpush.bf16.msra.mxu0 0
    %962 = vmatpush.bf16.msra.mxu0 0
    %963 = vmatpush.bf16.msra.mxu0 %v951
    %964 = vmatpush.bf16.msra.mxu0 %v950
    %965 = vmatmul.bf16.gmra.mxu0 %v955
    %v966 = vpop.f32.mrf.mxu0
    %v967 = vadd.f32 %v940, %v966
    %v968 = vpop.f32.mrf.mxu0
    %v969 = vadd.f32 %v940, %v968
    %970 = vdwg.mxu0
    %v971 = vmax.f32 %v967, 0.0
    %v972 = vmax.f32 %v969, 0.0
    %v973 = vpack.c.bf16 %v972, %v971
    %v974 = vld [vmem:[%s8] sm:$0xf]
    %v975 = vld [vmem:[%s8 + $0x4] sm:$0xf]
    %v976 = vld [vmem:[%s8 + $0x8] sm:$0xf]
    %v977 = vld [vmem:[%s8 + $0xc] sm:$0xf]
    %v978 = vld [vmem:[%s8 + $0x10] sm:$0xf]
    %v979 = vld [vmem:[%s8 + $0x14] sm:$0xf]
    %v980 = vld [vmem:[%s8 + $0x18] sm:$0xf]
    %v981 = vld [vmem:[%s8 + $0x1c] sm:$0xf]
    %v982 = vld [vmem:[%s9] sm:$0x1]
    %v984 = vperm.slane %v982, 0
    %v994 = vunpack.c.l.b16 %v974
    %v995 = vunpack.c.l.b16 %v975
    %v996 = vunpack.c.l.b16 %v976
    %v997 = vunpack.c.l.b16 %v977
    %v998 = vunpack.c.l.b16 %v978
    %v999 = vunpack.c.l.b16 %v979
    %v1000 = vunpack.c.l.b16 %v980
    %v1001 = vunpack.c.l.b16 %v981
    %v1002 = vpack.c.b16 %v995, %v994
    %v1003 = vpack.c.b16 %v997, %v996
    %v1004 = vpack.c.b16 %v999, %v998
    %v1005 = vpack.c.b16 %v1001, %v1000
    %vm1010 = vcmask 523264
    %v1012 = vsel %vm1010, %v973, 0
    %1014 = vmatpush.bf16.msra.mxu0 0
    %1015 = vmatpush.bf16.msra.mxu0 0
    %1016 = vmatpush.bf16.msra.mxu0 0
    %1017 = vmatpush.bf16.msra.mxu0 0
    %1018 = vmatpush.bf16.msra.mxu0 %v1005
    %1019 = vmatpush.bf16.msra.mxu0 %v1004
    %1020 = vmatpush.bf16.msra.mxu0 %v1003
    %1021 = vmatpush.bf16.msra.mxu0 %v1002
    %1022 = vmatmul.bf16.gmra.mxu0 %v1012
    %v1023 = vpop.f32.mrf.mxu0
    %v1024 = vadd.f32 %v984, %v1023
    %v1025 = vpop.f32.mrf.mxu0
    %v1026 = vadd.f32 %v984, %v1025
    %1027 = vdwg.mxu0
    %v1028 = vadd.f32 %v931, %v1024
    %v1029 = vadd.f32 %v932, %v1026
    %v1030 = vsel %vm208, %v1028, 0.0
    %1031 = vadd.xlane.f32.xlu0 %v1030
    %v1032 = vpop.xlane.xlu0 %1031
    %v1033 = vsel %vm208, %v1029, 0.0
    %1034 = vadd.xlane.f32.xlu0 %v1033
    %v1035 = vpop.xlane.xlu0 %1034
    %v1036 = vmul.f32 %v1032, %v882
    %v1037 = vmul.f32 %v1035, %v882
    %v1038 = vsub.f32 %v1028, %v1036
    %v1039 = vsub.f32 %v1029, %v1037
    %v1040 = vmul.f32 %v1038, %v1038
    %v1041 = vmul.f32 %v1039, %v1039
    %v1042 = vsel %vm208, %v1040, 0.0
    %1043 = vadd.xlane.f32.xlu0 %v1042
    %v1044 = vpop.xlane.xlu0 %1043
    %v1045 = vsel %vm208, %v1041, 0.0
    %1046 = vadd.xlane.f32.xlu0 %v1045
    %v1047 = vpop.xlane.xlu0 %1046
    %v1048 = vmul.f32 %v1044, %v882
    %v1049 = vmul.f32 %v1047, %v882
    %v1050 = vadd.f32 %v1048, 1e-05
    %v1051 = vadd.f32 %v1049, 1e-05
    %v1052 = vrsqrt.pop %v1050
    %v1053 = vmul.f32 %v1052, %v1050
    %v1054 = vmul.f32 %v1053, %v1052
    %v1055 = vmul.f32 0.5, %v1054
    %v1056 = vsub.f32 1.5, %v1055
    %v1057 = vmul.f32 %v1052, %v1056
    %vm1058 = vweird.f32 %v1050
    %vm1059 = vweird.f32 %v1052
    %vm1060 = vmor %vm1058, %vm1059
    %v1061 = vsel %vm1060, %v1052, %v1057
    %v1062 = vrsqrt.pop %v1051
    %v1063 = vmul.f32 %v1062, %v1051
    %v1064 = vmul.f32 %v1063, %v1062
    %v1065 = vmul.f32 0.5, %v1064
    %v1066 = vsub.f32 1.5, %v1065
    %v1067 = vmul.f32 %v1062, %v1066
    %vm1068 = vweird.f32 %v1051
    %vm1069 = vweird.f32 %v1062
    %vm1070 = vmor %vm1068, %vm1069
    %v1071 = vsel %vm1070, %v1062, %v1067
    %v1072 = vmul.f32 %v1038, %v1061
    %v1073 = vmul.f32 %v1039, %v1071
    %v1074 = vld [vmem:[%s12] sm:$0x1]
    %v1076 = vperm.slane %v1074, 0
    %v1078 = vmul.f32 %v1072, %v1076
    %v1079 = vmul.f32 %v1073, %v1076
    %v1080 = vld [vmem:[%s13] sm:$0x1]
    %v1082 = vperm.slane %v1080, 0
    %v1084 = vadd.f32 %v1078, %v1082
    %v1085 = vadd.f32 %v1079, %v1082
    %1086 = vst.msk [vmem:[#allocation2] sm:$0xff] %vm208, %v1084
    %1087 = vst.msk [vmem:[#allocation2 + $0x8] sm:$0xff] %vm208, %v1085
    // Predicated region
    $region58: #{tpu_custom_call.1} parent=1 // pred_check
      _
    $region59: #{tpu_custom_call.1} parent=1 // pred_check_branch
      %1089 = sbr.rel (0) target = $region61
    $region60: #{tpu_custom_call.1} parent=1 // pred_region
      %1091 = vsyncadd [#allocation3], 0
      %s1092 = sshll.u32 [#allocation2], 4
      %s1093 = int_to_ptr.vmem [resolvable:$true] %s1092
      %s1094 = sshll.u32 %s14, 4
      %s1095 = int_to_ptr.hbm [resolvable:$true] %s1094
      %1100 = dma.vmem_to_hbm [thread:$0]  %s1093, 256, %s1095, [#allocation3], 128, 128, 8
    $region61: #{tpu_custom_call.1} parent=1 // pred_fallthru
      _
    // Predicated region
    $region62: #{tpu_custom_call.1} parent=1 // pred_check
      _
    $region63: #{tpu_custom_call.1} parent=1 // pred_check_branch
      %1102 = sbr.rel (0) target = $region65
    $region64: #{tpu_custom_call.1} parent=1 // pred_region
      %1104 = dma.done [#allocation3], 256
    $region65: #{tpu_custom_call.1} parent=1 // pred_fallthru
      _
    %1105 = vsyncpa [#allocation3], 1

</llo_original>
